<compile_context>
chip_gen: v5e
topology: v5e:2x2
jax: 0.10.0
libtpu: 0.0.40
codegen_flags: <defaults>
</compile_context>

<pallas_src>
import math

import jax
import jax.numpy as jnp
from jax import lax
from jax.experimental import pallas as pl
from jax.experimental.pallas import tpu as pltpu


LANE = 128            # vreg lane width
SUBLANE = 8           # vreg sublane count (f32)
_DEFAULT_TILE_T = 256 # output-time rows per grid step (multiple of 8)


def _round_up(x, m):
    return (x + m - 1) // m * m


# ----------------------------------------------------------------------------
# Pallas kernel: fused (R shifted matmuls + bias + GLU) for one time tile
# ----------------------------------------------------------------------------
def _conv_glu_kernel(xm_ref, xh_ref, w_ref, b_ref, o_ref):
    # xm_ref: (tile_t, C2p)   bf16 pair-rows, main tile   (streamed)
    # xh_ref: (H8, C2p)       bf16 pair-rows, halo rows   (streamed, tiny)
    # w_ref : (R, C2p, N2p)   bf16 stacked per-tap weights (resident)
    # b_ref : (1, N2p)        f32 bias                     (resident)
    # o_ref : (tile_t, Np)    GLU output
    tile_t = xm_ref.shape[0]
    R = w_ref.shape[0]

    x_main = xm_ref[...]
    acc = jnp.dot(x_main, w_ref[0], preferred_element_type=jnp.float32)
    if R > 1:
        x_full = jnp.concatenate([x_main, xh_ref[...]], axis=0)
        for r in range(1, R):                      # static unrolled taps
            acc = acc + jnp.dot(x_full[r:r + tile_t], w_ref[r],
                                preferred_element_type=jnp.float32)

    y = acc + b_ref[...]
    n = o_ref.shape[-1]
    a = y[:, :n]                                   # lane-aligned halves
    g = y[:, n:]
    gate = pl.reciprocal(1.0 + jnp.exp(-g), approx=True)   # sigmoid via EUP
    o_ref[...] = (a * gate).astype(o_ref.dtype)


# ----------------------------------------------------------------------------
# One Conv1d(stride=2, padding=k//2) + GLU(dim=channel) layer
# ----------------------------------------------------------------------------
def _conv1d_glu_pallas(x_btc, weight_oik, bias_o, *, stride=2,
                       tile_t=_DEFAULT_TILE_T,
                       compute_dtype=jnp.bfloat16,
                       out_dtype=jnp.bfloat16):
    """x_btc: (B, T, C_store); only the first weight.shape[1] channels are real
    (the rest are zero lane-padding from a previous layer).

    Returns (B, T_out, Np) with Np = round_up(C_out2 // 2, 128); padded output
    channels are exactly zero.
    """
    B, T, C_store = x_btc.shape
    C_out2, C_real, k = weight_oik.shape
    assert stride == 2 and C_real <= C_store

    pad = k // 2
    T_out = (T + 2 * pad - k) // stride + 1
    R = (k + 1) // 2                       # taps on the pair-row sequence
    N = C_out2 // 2
    Np = _round_up(N, LANE)
    N2p = 2 * Np
    C2 = 2 * C_store
    C2p = _round_up(C2, LANE)
    H8 = _round_up(max(R - 1, 1), SUBLANE)  # halo rows fetched (>= R-1)

    tile_t = max(SUBLANE, min(tile_t, _round_up(T_out, SUBLANE)))
    tile_t = _round_up(tile_t, H8)
    n_tiles = (T_out + tile_t - 1) // tile_t
    T2_tot = (n_tiles + 1) * tile_t         # main tiles + halo/pad slack
    halo_stride = tile_t // H8

    # ---- glue: stride-2 conv -> stride-1 pair rows (single layout pass) ----
    rows = T_out + R - 1                    # real pair rows needed
    L = 2 * rows                            # padded time length (even)
    x_p = jnp.pad(x_btc.astype(compute_dtype),
                  ((0, 0), (pad, L - pad - T), (0, 0)))
    x2 = x_p.reshape(B, rows, C2)
    x2 = jnp.pad(x2, ((0, 0), (0, T2_tot - rows), (0, C2p - C2)))

    # ---- weights: (2N, C_real, k) -> (R, C2p, N2p), GLU halves lane-padded --
    w_t = jnp.transpose(weight_oik, (2, 1, 0))                  # (k, C_real, 2N)
    w_a = jnp.pad(w_t[..., :N], ((0, 0), (0, 0), (0, Np - N)))
    w_g = jnp.pad(w_t[..., N:], ((0, 0), (0, 0), (0, Np - N)))
    w_j = jnp.concatenate([w_a, w_g], axis=-1)                  # (k, C_real, N2p)
    w_j = jnp.pad(w_j, ((0, 2 * R - k), (0, C_store - C_real), (0, 0)))
    w_stk = w_j.reshape(R, C2, N2p)
    w_stk = jnp.pad(w_stk, ((0, 0), (0, C2p - C2), (0, 0))).astype(compute_dtype)

    b_mat = jnp.concatenate([jnp.pad(bias_o[:N], (0, Np - N)),
                             jnp.pad(bias_o[N:], (0, Np - N))])
    b_mat = b_mat.reshape(1, N2p).astype(jnp.float32)

    # ---- tiled, auto-pipelined pallas_call ----------------------------------
    grid = (B, n_tiles)
    cost = pl.CostEstimate(
        flops=2 * B * n_tiles * tile_t * R * C2p * N2p,
        transcendentals=B * n_tiles * tile_t * Np,
        bytes_accessed=(x2.size * x2.dtype.itemsize
                        + w_stk.size * w_stk.dtype.itemsize
                        + b_mat.size * b_mat.dtype.itemsize
                        + B * n_tiles * tile_t * Np * jnp.dtype(out_dtype).itemsize))

    out = pl.pallas_call(
        _conv_glu_kernel,
        out_shape=jax.ShapeDtypeStruct((B, n_tiles * tile_t, Np), out_dtype),
        grid=grid,
        in_specs=[
            pl.BlockSpec((None, tile_t, C2p), lambda b, i: (b, i, 0)),      # main
            pl.BlockSpec((None, H8, C2p),
                         lambda b, i: (b, (i + 1) * halo_stride, 0)),       # halo
            pl.BlockSpec((R, C2p, N2p), lambda b, i: (0, 0, 0)),            # resident
            pl.BlockSpec((1, N2p), lambda b, i: (0, 0)),                    # resident
        ],
        out_specs=pl.BlockSpec((None, tile_t, Np), lambda b, i: (b, i, 0)),
        compiler_params=pltpu.CompilerParams(
            dimension_semantics=("parallel", "parallel"),
            vmem_limit_bytes=64 * 1024 * 1024),
        cost_estimate=cost,
    )(x2, x2, w_stk, b_mat)

    return out[:, :T_out, :]                 # drop padded time rows


# ----------------------------------------------------------------------------
# Conv1dSubsampler forward
# ----------------------------------------------------------------------------
def conv1d_subsampler_forward(src_tokens, src_lengths, params):
    """src_tokens: (B, T, C_in), src_lengths: (B,) int32.

    Returns (x, out_lengths) with x of shape (T_out, B, out_channels),
    matching the PyTorch module's output conventions.
    """
    n_layers = len(params)
    x = src_tokens                                      # (B, T, C) layout
    for li, (w, b) in enumerate(params):
        last = li == n_layers - 1
        x = _conv1d_glu_pallas(
            x, w, b, stride=2,
            out_dtype=(src_tokens.dtype if last else jnp.bfloat16))

    n_out = params[-1][0].shape[0] // 2
    x = x[..., :n_out]                                  # drop lane padding
    x = jnp.transpose(x, (1, 0, 2))                     # (B,T,C) -> (T,B,C)

    # TODO(synk): the length arithmetic is trivial scalar work; it stays in JAX.
    out = src_lengths
    for _ in range(n_layers):
        out = jnp.floor((out.astype(jnp.float32) - 1.0) / 2.0 + 1.0).astype(jnp.int32)
    return x, out


# ----------------------------------------------------------------------------
# Deterministic parameter init (matches nn.Conv1d shapes & default init style)
# ----------------------------------------------------------------------------
def init_params(key, in_channels, mid_channels, out_channels, kernel_sizes=(3, 3)):
    n_layers = len(kernel_sizes)
    params = []
    for i, k in enumerate(kernel_sizes):
        c_in = in_channels if i == 0 else mid_channels // 2
        c_out = mid_channels if i < n_layers - 1 else out_channels * 2
        key, kw, kb = jax.random.split(key, 3)
        bound = 1.0 / math.sqrt(c_in * k)
        w = jax.random.uniform(kw, (c_out, c_in, k), jnp.float32, -bound, bound)
        b = jax.random.uniform(kb, (c_out,), jnp.float32, -bound, bound)
        params.append((w, b))
    return params


# ----------------------------------------------------------------------------
# Pure-JAX f32 reference (lax.conv) for the correctness check
# ----------------------------------------------------------------------------
def _reference_forward(src_tokens, src_lengths, params):
    x = jnp.transpose(src_tokens, (0, 2, 1))            # (B, C, T)  == NCH
    for (w, b) in params:
        k = w.shape[-1]
        y = lax.conv_general_dilated(
            x, w, window_strides=(2,), padding=[(k // 2, k // 2)],
            dimension_numbers=("NCH", "OIH", "NCH"))
        y = y + b[None, :, None]
        n = y.shape[1] // 2
        x = y[:, :n, :] * jax.nn.sigmoid(y[:, n:, :])
    x = jnp.transpose(x, (2, 0, 1))                     # (T_out, B, C_out)
    out = src_lengths
    for _ in range(len(params)):
        out = jnp.floor((out.astype(jnp.float32) - 1.0) / 2.0 + 1.0).astype(jnp.int32)
    return x, out


if __name__ == "__main__":
    B, T, C_IN = 2, 16, 8
    MID, OUT = 16, 8

    key = jax.random.PRNGKey(0)
    key, k_x = jax.random.split(key)
    src_tokens = jax.random.normal(k_x, (B, T, C_IN), jnp.float32)
    src_lengths = jnp.array([16, 11], dtype=jnp.int32)

    params = init_params(jax.random.PRNGKey(0), C_IN, MID, OUT, kernel_sizes=(3, 3))

    x_out, len_out = conv1d_subsampler_forward(src_tokens, src_lengths, params)
    x_out = jax.block_until_ready(x_out)
    len_out = jax.block_until_ready(len_out)

    x_ref, len_ref = _reference_forward(src_tokens, src_lengths, params)
    assert x_out.shape == x_ref.shape, (x_out.shape, x_ref.shape)
    # bf16 MXU operands + approx-reciprocal sigmoid vs f32 reference -> loose tol.
    assert jnp.allclose(x_out, x_ref, atol=5e-2, rtol=5e-2), "mismatch vs reference"
    assert jnp.array_equal(len_out, len_ref), "length mismatch"

    print("KERNEL_OK")
</pallas_src>

<mosaic_0001>
module attributes {stable_mosaic.version = 11 : i64} {
  func.func @_conv_glu_kernel(%arg0: i32, %arg1: i32, %arg2: memref<1x8x128xbf16, #tpu.memory_space<vmem>>, %arg3: memref<1x8x128xbf16, #tpu.memory_space<vmem>>, %arg4: memref<2x128x256xbf16, #tpu.memory_space<vmem>>, %arg5: memref<1x256xf32, #tpu.memory_space<vmem>>, %arg6: memref<1x8x128xbf16, #tpu.memory_space<vmem>>) attributes {dimension_semantics = [#tpu.dimension_semantics<parallel>, #tpu.dimension_semantics<parallel>], iteration_bounds = array<i64: 2, 1>, scalar_prefetch = 0 : i64, scratch_operands = 0 : i64, tpu.core_type = #tpu.core_type<tc>, window_params = [{transform_indices = @transform_0, window_bounds = array<i64: 1, 8, 128>}, {transform_indices = @transform_1, window_bounds = array<i64: 1, 8, 128>}, {pipeline_mode = #tpu.pipeline_mode<synchronous>, transform_indices = @transform_2, window_bounds = array<i64: 2, 128, 256>}, {pipeline_mode = #tpu.pipeline_mode<synchronous>, transform_indices = @transform_3, window_bounds = array<i64: 1, 256>}, {transform_indices = @transform_4, window_bounds = array<i64: 1, 8, 128>}]} {
    %c0 = arith.constant 0 : index
    %c0_0 = arith.constant 0 : index
    %c0_1 = arith.constant 0 : index
    %0 = vector.load %arg2[%c0, %c0_0, %c0_1] : memref<1x8x128xbf16, #tpu.memory_space<vmem>>, vector<1x8x128xbf16>
    %1 = vector.shape_cast %0 : vector<1x8x128xbf16> to vector<8x128xbf16>
    %c0_2 = arith.constant 0 : index
    %c0_3 = arith.constant 0 : index
    %c0_4 = arith.constant 0 : index
    %2 = vector.load %arg4[%c0_2, %c0_3, %c0_4] : memref<2x128x256xbf16, #tpu.memory_space<vmem>>, vector<1x128x256xbf16>
    %3 = vector.shape_cast %2 : vector<1x128x256xbf16> to vector<128x256xbf16>
    %cst = arith.constant dense<0.000000e+00> : vector<8x256xf32>
    %4 = tpu.matmul %1, %3, %cst {dimension_numbers = #tpu.dot_dimension_numbers<[1], [0], [0], [1], [0, 0, 1, 1], [], []>} : vector<8x128xbf16>, vector<128x256xbf16>, vector<8x256xf32> -> vector<8x256xf32>
    %c0_5 = arith.constant 0 : index
    %c0_6 = arith.constant 0 : index
    %c0_7 = arith.constant 0 : index
    %5 = vector.load %arg3[%c0_5, %c0_6, %c0_7] : memref<1x8x128xbf16, #tpu.memory_space<vmem>>, vector<1x8x128xbf16>
    %6 = vector.shape_cast %5 : vector<1x8x128xbf16> to vector<8x128xbf16>
    %7 = tpu.concatenate %1, %6 in 0 : vector<8x128xbf16>, vector<8x128xbf16> -> vector<16x128xbf16>
    %8 = vector.extract_strided_slice %7 {offsets = [1, 0], sizes = [8, 128], strides = [1, 1]} : vector<16x128xbf16> to vector<8x128xbf16>
    %c1 = arith.constant 1 : index
    %c0_8 = arith.constant 0 : index
    %c0_9 = arith.constant 0 : index
    %9 = vector.load %arg4[%c1, %c0_8, %c0_9] : memref<2x128x256xbf16, #tpu.memory_space<vmem>>, vector<1x128x256xbf16>
    %10 = vector.shape_cast %9 : vector<1x128x256xbf16> to vector<128x256xbf16>
    %cst_10 = arith.constant dense<0.000000e+00> : vector<8x256xf32>
    %11 = tpu.matmul %8, %10, %cst_10 {dimension_numbers = #tpu.dot_dimension_numbers<[1], [0], [0], [1], [0, 0, 1, 1], [], []>} : vector<8x128xbf16>, vector<128x256xbf16>, vector<8x256xf32> -> vector<8x256xf32>
    %12 = arith.addf %4, %11 : vector<8x256xf32>
    %c0_11 = arith.constant 0 : index
    %c0_12 = arith.constant 0 : index
    %13 = vector.load %arg5[%c0_11, %c0_12] : memref<1x256xf32, #tpu.memory_space<vmem>>, vector<1x256xf32>
    %14 = vector.broadcast %13 : vector<1x256xf32> to vector<8x256xf32>
    %15 = arith.addf %12, %14 : vector<8x256xf32>
    %16 = vector.extract_strided_slice %15 {offsets = [0, 0], sizes = [8, 128], strides = [1, 1]} : vector<8x256xf32> to vector<8x128xf32>
    %17 = vector.extract_strided_slice %15 {offsets = [0, 128], sizes = [8, 128], strides = [1, 1]} : vector<8x256xf32> to vector<8x128xf32>
    %cst_13 = arith.constant 0.000000e+00 : f32
    %18 = vector.broadcast %cst_13 : f32 to vector<8x128xf32>
    %19 = arith.subf %18, %17 : vector<8x128xf32>
    %20 = math.exp %19 : vector<8x128xf32>
    %cst_14 = arith.constant 1.000000e+00 : f32
    %21 = vector.broadcast %cst_14 : f32 to vector<8x128xf32>
    %22 = arith.addf %21, %20 : vector<8x128xf32>
    %23 = tpu.reciprocal %22 {approx = true} : vector<8x128xf32> -> vector<8x128xf32>
    %24 = arith.mulf %16, %23 : vector<8x128xf32>
    %25 = arith.truncf %24 : vector<8x128xf32> to vector<8x128xbf16>
    %c0_15 = arith.constant 0 : index
    %c0_16 = arith.constant 0 : index
    %c0_17 = arith.constant 0 : index
    %26 = vector.load %arg6[%c0_15, %c0_16, %c0_17] : memref<1x8x128xbf16, #tpu.memory_space<vmem>>, vector<1x8x128xbf16>
    %27 = vector.shape_cast %26 : vector<1x8x128xbf16> to vector<8x128xbf16>
    %28 = vector.shape_cast %25 : vector<8x128xbf16> to vector<1x8x128xbf16>
    tpu.vector_store %arg6[%c0_15, %c0_16, %c0_17], %28 {strides = array<i32>} : memref<1x8x128xbf16, #tpu.memory_space<vmem>>, vector<1x8x128xbf16>,
    return
  }
  func.func @transform_0(%arg0: i32, %arg1: i32) -> (i32, i32, i32) {
    %c0_i32 = arith.constant 0 : i32
    %c0_i32_0 = arith.constant 0 : i32
    return %arg0, %arg1, %c0_i32 : i32, i32, i32
  }
  func.func @transform_1(%arg0: i32, %arg1: i32) -> (i32, i32, i32) {
    %c1_i32 = arith.constant 1 : i32
    %0 = arith.addi %arg1, %c1_i32 : i32
    %c1_i32_0 = arith.constant 1 : i32
    %1 = arith.muli %0, %c1_i32_0 : i32
    %c0_i32 = arith.constant 0 : i32
    %c0_i32_1 = arith.constant 0 : i32
    return %arg0, %1, %c0_i32 : i32, i32, i32
  }
  func.func @transform_2(%arg0: i32, %arg1: i32) -> (i32, i32, i32) {
    %c0_i32 = arith.constant 0 : i32
    %c0_i32_0 = arith.constant 0 : i32
    %c0_i32_1 = arith.constant 0 : i32
    %c0_i32_2 = arith.constant 0 : i32
    return %c0_i32, %c0_i32_0, %c0_i32_1 : i32, i32, i32
  }
  func.func @transform_3(%arg0: i32, %arg1: i32) -> (i32, i32) {
    %c0_i32 = arith.constant 0 : i32
    %c0_i32_0 = arith.constant 0 : i32
    %c0_i32_1 = arith.constant 0 : i32
    return %c0_i32, %c0_i32_0 : i32, i32
  }
  func.func @transform_4(%arg0: i32, %arg1: i32) -> (i32, i32, i32) {
    %c0_i32 = arith.constant 0 : i32
    %c0_i32_0 = arith.constant 0 : i32
    return %arg0, %arg1, %c0_i32 : i32, i32, i32
  }
}

</mosaic_0001>

<llo_original>
// kernel: tpu_custom_call.1
$region0: #{tpu_custom_call.1}
  #allocation0 [shape = 'u32[]', space=smem, size = 0x4, offset = 0x4, fixed_abs, tag = 'smem constant byte address 0x4 - core index']
  #allocation1 [shape = 'u32[72,128]{1,0:T(1,128)}', space=vmem, size = 0x9000, scoped, tag = 'internal scratch']
  %s0 = inlined_call_operand.hbm [shape: bf16[2,16,128], index: 0, kind: input, shape index: {}]
  %s1 = inlined_call_operand.hbm [shape: bf16[2,16,128], index: 1, kind: input, shape index: {}]
  %s2 = inlined_call_operand.hbm [shape: bf16[2,128,256], index: 2, kind: input, shape index: {}]
  %s3 = inlined_call_operand.vmem [shape: f32[1,256], index: 3, kind: input, shape index: {}]
  %s4 = inlined_call_operand.hbm [shape: bf16[2,8,128], index: 4, kind: output, shape index: {}]
  %s5 = sld [smem:[#allocation0]]
  $region61: #{tpu_custom_call.1} parent=0
    _
  %s7 = ssub.s32 1, %s5
  %s8 = scalar_select 0, %s7, %s5
  $region1: #{tpu_custom_call.1} parent=0
    #allocation2 [shape = 'u8[4096]{0}', space=vmem, size = 0x1000, scoped, tag = 'input window, operand 0']
    #allocation3 [shape = 's32[2]{0}', space=sflag, size = 0x8, scoped, tag = 'scoped memory for tpu_custom_call.1']
    #allocation4 [shape = 's32[2]{0}', space=sflag, size = 0x8, scoped, tag = 'scoped memory for tpu_custom_call.1']
    #allocation5 [shape = 'u8[4096]{0}', space=vmem, size = 0x1000, scoped, tag = 'input window, operand 1']
    #allocation6 [shape = 's32[2]{0}', space=sflag, size = 0x8, scoped, tag = 'scoped memory for tpu_custom_call.1']
    #allocation7 [shape = 'u8[131072]{0}', space=vmem, size = 0x20000, scoped, tag = 'input window, operand 2, single buffered']
    #allocation8 [shape = 'u8[4096]{0}', space=vmem, size = 0x1000, scoped, tag = 'output window, operand 0']
    %9 = vsyncpa [#allocation3], 0
    %s10 = scalar_lea.sflag [#allocation3], 1
    %11 = vsyncpa %s10, 0
    %12 = vsyncpa [#allocation6], 0
    %s13 = scalar_lea.sflag [#allocation6], 1
    %14 = vsyncpa %s13, 0
    %15 = vsyncpa [#allocation4], 0
    %s16 = scalar_lea.sflag [#allocation4], 1
    %17 = vsyncpa %s16, 0
    loop: start=0, step=1, limit=4
    $region2: #{tpu_custom_call.1} parent=1 // loop_pre_header
      _
    $region3: #{tpu_custom_call.1} parent=1 // loop_header
      %s19 = sphi 0, %s23
      %p20 = scmp.ge.s32.totalorder %s19, 4
      %s26 = sphi 0, %s38
      %s27 = sphi 0, %s34
      %s28 = sphi 0, %s26
      %s29 = sphi 0, %s27
      %s30 = sphi 0, %s28
      %s31 = sphi 0, %s29
      %s43 = sphi 0, %s45
      %s46 = sphi 0, %s43
      %s47 = sphi 0, %s46
      %s63 = sphi 0, %s47
      %s73 = sphi 0, %s75
      %s76 = sphi 0, %s73
      %s77 = sphi 0, %s76
      %s93 = sphi 0, %s77
      %s97 = sphi 0, %s97
      %s99 = sphi 0, %s97
      %s100 = sphi 0, %s99
      %s114 = sphi 0, %s100
      %s118 = sphi 0, %s118
      %s120 = sphi 0, %s118
      %s121 = sphi 0, %s120
      %s135 = sphi 0, %s121
      %s143 = sphi 0, %s145
      %s146 = sphi 0, %s143
      %s147 = sphi 0, %s146
      %s163 = sphi 0, %s147
    $region4: #{tpu_custom_call.1} parent=1 // loop_header_branch
      %22 = sbr.rel (%p20) target = $region8
    $region5: #{tpu_custom_call.1} parent=1 // loop_body
      %s24 = ssub.s32 %s19, 1
      %s25 = ssub.s32 %s19, 2
      %s32 = sadd.s32 1, %s27
      %p33 = scmp.ge.s32.totalorder %s32, 1
      %s34 = scalar_select %p33, 0, %s32
      %s35 = sadd.s32 1, %s26
      %s36 = scalar_select %p33, %s35, %s26
      %p37 = scmp.ge.s32.totalorder %s36, 2
      %s38 = scalar_select %p37, 0, %s36
      %s39 = ssub.s32 %s26, %s38
      %s40 = ssub.s32 %s27, %s34
      %s41 = sor.u32 %s39, %s40
      %p42 = scmp.eq.s32.totalorder %s41, 0
      %s44 = sadd.s32 %s43, 1
      %s45 = scalar_select %p42, %s43, %s44
      %p48 = pneg %p42
      %p49 = scmp.eq.s32.totalorder %s19, 1
      %p50 = por %p48, %p49
      %p51 = scmp.ne.s32.totalorder %s43, %s46
      %p52 = scmp.eq.s32.totalorder %s19, 0
      %p53 = por %p51, %p52
      %p54 = scmp.ne.s32.totalorder %s43, %s46
      %p55 = scmp.eq.s32.totalorder %s24, 1
      %p56 = por %p54, %p55
      %p57 = scmp.ne.s32.totalorder %s46, %s47
      %p58 = scmp.eq.s32.totalorder %s24, 0
      %p59 = por %p57, %p58
      %p60 = scmp.ne.s32.totalorder %s46, %s47
      %p61 = scmp.eq.s32.totalorder %s25, 1
      %p62 = por %p60, %p61
      %p64 = scmp.ne.s32.totalorder %s47, %s63
      %p65 = scmp.eq.s32.totalorder %s25, 0
      %p66 = por %p64, %p65
      %s67 = sadd.s32 %s27, 1
      %s68 = sadd.s32 %s34, 1
      %s69 = ssub.s32 %s26, %s38
      %s70 = ssub.s32 %s67, %s68
      %s71 = sor.u32 %s69, %s70
      %p72 = scmp.eq.s32.totalorder %s71, 0
      %s74 = sadd.s32 %s73, 1
      %s75 = scalar_select %p72, %s73, %s74
      %p78 = pneg %p72
      %p79 = scmp.eq.s32.totalorder %s19, 1
      %p80 = por %p78, %p79
      %p81 = scmp.ne.s32.totalorder %s73, %s76
      %p82 = scmp.eq.s32.totalorder %s19, 0
      %p83 = por %p81, %p82
      %p84 = scmp.ne.s32.totalorder %s73, %s76
      %p85 = scmp.eq.s32.totalorder %s24, 1
      %p86 = por %p84, %p85
      %p87 = scmp.ne.s32.totalorder %s76, %s77
      %p88 = scmp.eq.s32.totalorder %s24, 0
      %p89 = por %p87, %p88
      %p90 = scmp.ne.s32.totalorder %s76, %s77
      %p91 = scmp.eq.s32.totalorder %s25, 1
      %p92 = por %p90, %p91
      %p94 = scmp.ne.s32.totalorder %s77, %s93
      %p95 = scmp.eq.s32.totalorder %s25, 0
      %p96 = por %p94, %p95
      %s98 = sadd.s32 %s97, 1
      %p101 = scmp.eq.s32.totalorder %s19, 1
      %p102 = scmp.ne.s32.totalorder %s97, %s99
      %p103 = scmp.eq.s32.totalorder %s19, 0
      %p104 = por %p102, %p103
      %p105 = scmp.ne.s32.totalorder %s97, %s99
      %p106 = scmp.eq.s32.totalorder %s24, 1
      %p107 = por %p105, %p106
      %p108 = scmp.ne.s32.totalorder %s99, %s100
      %p109 = scmp.eq.s32.totalorder %s24, 0
      %p110 = por %p108, %p109
      %p111 = scmp.ne.s32.totalorder %s99, %s100
      %p112 = scmp.eq.s32.totalorder %s25, 1
      %p113 = por %p111, %p112
      %p115 = scmp.ne.s32.totalorder %s100, %s114
      %p116 = scmp.eq.s32.totalorder %s25, 0
      %p117 = por %p115, %p116
      %s119 = sadd.s32 %s118, 1
      %p122 = scmp.eq.s32.totalorder %s19, 1
      %p123 = scmp.ne.s32.totalorder %s118, %s120
      %p124 = scmp.eq.s32.totalorder %s19, 0
      %p125 = por %p123, %p124
      %p126 = scmp.ne.s32.totalorder %s118, %s120
      %p127 = scmp.eq.s32.totalorder %s24, 1
      %p128 = por %p126, %p127
      %p129 = scmp.ne.s32.totalorder %s120, %s121
      %p130 = scmp.eq.s32.totalorder %s24, 0
      %p131 = por %p129, %p130
      %p132 = scmp.ne.s32.totalorder %s120, %s121
      %p133 = scmp.eq.s32.totalorder %s25, 1
      %p134 = por %p132, %p133
      %p136 = scmp.ne.s32.totalorder %s121, %s135
      %p137 = scmp.eq.s32.totalorder %s25, 0
      %p138 = por %p136, %p137
      %s139 = ssub.s32 %s26, %s38
      %s140 = ssub.s32 %s27, %s34
      %s141 = sor.u32 %s139, %s140
      %p142 = scmp.eq.s32.totalorder %s141, 0
      %s144 = sadd.s32 %s143, 1
      %s145 = scalar_select %p142, %s143, %s144
      %p148 = pneg %p142
      %p149 = scmp.eq.s32.totalorder %s19, 1
      %p150 = por %p148, %p149
      %p151 = scmp.ne.s32.totalorder %s143, %s146
      %p152 = scmp.eq.s32.totalorder %s19, 0
      %p153 = por %p151, %p152
      %p154 = scmp.ne.s32.totalorder %s143, %s146
      %p155 = scmp.eq.s32.totalorder %s24, 1
      %p156 = por %p154, %p155
      %p157 = scmp.ne.s32.totalorder %s146, %s147
      %p158 = scmp.eq.s32.totalorder %s24, 0
      %p159 = por %p157, %p158
      %p160 = scmp.ne.s32.totalorder %s146, %s147
      %p161 = scmp.eq.s32.totalorder %s25, 1
      %p162 = por %p160, %p161
      %p164 = scmp.ne.s32.totalorder %s147, %s163
      %p165 = scmp.eq.s32.totalorder %s25, 0
      %p166 = por %p164, %p165
      %p167 = scmp.le.s32.totalorder 1, %s19
      %p168 = scmp.lt.s32.totalorder %s19, 3
      %p169 = pnand %p167, %p168
      %p170 = pneg %p169
      // Predicated region
      $region9: #{tpu_custom_call.1} parent=5 // pred_check
        _
      $region10: #{tpu_custom_call.1} parent=5 // pred_check_branch
        %172 = sbr.rel (%p169) target = $region12
      $region11: #{tpu_custom_call.1} parent=5 // pred_region
        %s173 = ssub.s32 %s19, 1
        // Predicated region
        $region13: #{tpu_custom_call.1} parent=11 // pred_check
          %p174 = pneg %p110
        $region14: #{tpu_custom_call.1} parent=11 // pred_check_branch
          %176 = sbr.rel (%p174) target = $region16
        $region15: #{tpu_custom_call.1} parent=11 // pred_region
          %178 = vsyncadd [#allocation6], 0
          %s179 = sshll.u32 %s2, 4
          %s180 = int_to_ptr.hbm [resolvable:$true] %s179
          %s181 = sshll.u32 [#allocation7], 4
          %s182 = int_to_ptr.vmem [resolvable:$true] %s181
          %187 = dma.hbm_to_vmem [thread:$0]  %s180, 4096, %s182, [#allocation6], 128, 128, 8
        $region16: #{tpu_custom_call.1} parent=11 // pred_fallthru
          _
        // Predicated region
        $region17: #{tpu_custom_call.1} parent=11 // pred_check
          %p188 = pneg %p131
        $region18: #{tpu_custom_call.1} parent=11 // pred_check_branch
          %190 = sbr.rel (%p188) target = $region20
        $region19: #{tpu_custom_call.1} parent=11 // pred_region
          _
        $region20: #{tpu_custom_call.1} parent=11 // pred_fallthru
          _
      $region12: #{tpu_custom_call.1} parent=5 // pred_fallthru
        _
      %p191 = scmp.lt.s32.totalorder %s19, 2
      // Predicated region
      $region21: #{tpu_custom_call.1} parent=5 // pred_check
        %p192 = pneg %p191
      $region22: #{tpu_custom_call.1} parent=5 // pred_check_branch
        %194 = sbr.rel (%p192) target = $region24
      $region23: #{tpu_custom_call.1} parent=5 // pred_region
        // Predicated region
        $region25: #{tpu_custom_call.1} parent=23 // pred_check
          %p195 = pneg %p53
        $region26: #{tpu_custom_call.1} parent=23 // pred_check_branch
          %197 = sbr.rel (%p195) target = $region28
        $region27: #{tpu_custom_call.1} parent=23 // pred_region
          %s198 = sand.u32 %s43, 1
          %s199 = scalar_lea.sflag [#allocation3], %s198
          %s200 = sand.u32 %s43, 1
          %s201 = smul.addr %s200, 4
          %s202 = scalar_lea.vmem [#allocation2], %s201
          %204 = vsyncadd %s199, 0
          %s205 = smul.addr %s26, 2
          %s206 = sadd.s32 %s27, %s205
          %s207 = smul.addr %s206, 4
          %s208 = scalar_lea.hbm %s0, %s207
          %s210 = sshll.u32 %s208, 4
          %s211 = int_to_ptr.hbm [resolvable:$true] %s210
          %s212 = sshll.u32 %s202, 4
          %s213 = int_to_ptr.vmem [resolvable:$true] %s212
          %215 = dma.hbm_to_vmem [thread:$0]  %s211, 64, %s213, %s199
        $region28: #{tpu_custom_call.1} parent=23 // pred_fallthru
          _
        // Predicated region
        $region29: #{tpu_custom_call.1} parent=23 // pred_check
          %p216 = pneg %p83
        $region30: #{tpu_custom_call.1} parent=23 // pred_check_branch
          %218 = sbr.rel (%p216) target = $region32
        $region31: #{tpu_custom_call.1} parent=23 // pred_region
          %s219 = sand.u32 %s19, 1
          %s220 = scalar_lea.sflag [#allocation6], %s219
          %s221 = sand.u32 %s73, 1
          %s222 = smul.addr %s221, 4
          %s223 = scalar_lea.vmem [#allocation5], %s222
          %s224 = sadd.s32 %s27, 1
          %226 = vsyncadd %s220, 0
          %s227 = smul.addr %s26, 2
          %s228 = sadd.s32 %s224, %s227
          %s229 = smul.addr %s228, 4
          %s230 = scalar_lea.hbm %s1, %s229
          %s232 = sshll.u32 %s230, 4
          %s233 = int_to_ptr.hbm [resolvable:$true] %s232
          %s234 = sshll.u32 %s223, 4
          %s235 = int_to_ptr.vmem [resolvable:$true] %s234
          %237 = dma.hbm_to_vmem [thread:$0]  %s233, 64, %s235, %s220
        $region32: #{tpu_custom_call.1} parent=23 // pred_fallthru
          _
      $region24: #{tpu_custom_call.1} parent=5 // pred_fallthru
        _
      %p238 = scmp.le.s32.totalorder 1, %s19
      %p239 = scmp.lt.s32.totalorder %s19, 3
      %p240 = pnand %p238, %p239
      %p241 = pneg %p240
      // Predicated region
      $region33: #{tpu_custom_call.1} parent=5 // pred_check
        _
      $region34: #{tpu_custom_call.1} parent=5 // pred_check_branch
        %243 = sbr.rel (%p240) target = $region36
      $region35: #{tpu_custom_call.1} parent=5 // pred_region
        %s244 = ssub.s32 %s19, 1
        %s245 = sand.u32 %s46, 1
        %s246 = scalar_lea.sflag [#allocation3], %s245
        %s247 = sand.u32 %s46, 1
        %s248 = smul.addr %s247, 4
        %s249 = scalar_lea.vmem [#allocation2], %s248
        // Predicated region
        $region37: #{tpu_custom_call.1} parent=35 // pred_check
          %p250 = pneg %p59
        $region38: #{tpu_custom_call.1} parent=35 // pred_check_branch
          %252 = sbr.rel (%p250) target = $region40
        $region39: #{tpu_custom_call.1} parent=35 // pred_region
          %254 = dma.done %s246, 64
        $region40: #{tpu_custom_call.1} parent=35 // pred_fallthru
          _
        %s255 = sand.u32 %s24, 1
        %s256 = scalar_lea.sflag [#allocation6], %s255
        %s257 = sand.u32 %s76, 1
        %s258 = smul.addr %s257, 4
        %s259 = scalar_lea.vmem [#allocation5], %s258
        // Predicated region
        $region41: #{tpu_custom_call.1} parent=35 // pred_check
          %p260 = pneg %p89
        $region42: #{tpu_custom_call.1} parent=35 // pred_check_branch
          %262 = sbr.rel (%p260) target = $region44
        $region43: #{tpu_custom_call.1} parent=35 // pred_region
          %264 = dma.done %s256, 64
        $region44: #{tpu_custom_call.1} parent=35 // pred_fallthru
          _
        // Predicated region
        $region45: #{tpu_custom_call.1} parent=35 // pred_check
          %p265 = pneg %p110
        $region46: #{tpu_custom_call.1} parent=35 // pred_check_branch
          %267 = sbr.rel (%p265) target = $region48
        $region47: #{tpu_custom_call.1} parent=35 // pred_region
          %269 = dma.done [#allocation6], 4096
        $region48: #{tpu_custom_call.1} parent=35 // pred_fallthru
          _
        %s270 = sand.u32 %s46, 1
        %s271 = scalar_lea.sflag [#allocation3], %s270
        %s272 = sand.u32 %s46, 1
        %s273 = smul.addr %s272, 4
        %s274 = scalar_lea.vmem [#allocation2], %s273
        %p275 = pneg %p59
        %p276 = pneg %p56
        %s277 = sand.u32 %s24, 1
        %s278 = scalar_lea.sflag [#allocation6], %s277
        %s279 = sand.u32 %s76, 1
        %s280 = smul.addr %s279, 4
        %s281 = scalar_lea.vmem [#allocation5], %s280
        %p282 = pneg %p89
        %p283 = pneg %p86
        %p284 = pneg %p110
        %p285 = pneg %p107
        %p286 = pneg %p131
        %p287 = pneg %p128
        %p288 = pneg %p159
        %p289 = pneg %p156
        %s290 = sand.u32 %s146, 1
        %s291 = scalar_lea.sflag [#allocation4], %s290
        %s292 = sand.u32 %s146, 1
        %s293 = smul.addr %s292, 4
        %s294 = scalar_lea.vmem [#allocation8], %s293
        %s295 = sadd.s32 %s29, 1
        %v296 = vld [vmem:[%s249] sm:$0xf]
        %v297 = vld [vmem:[#allocation7] sm:$0xff]
        %v298 = vld [vmem:[#allocation7 + $0x8] sm:$0xff]
        %v299 = vld [vmem:[#allocation7 + $0x10] sm:$0xff]
        %v300 = vld [vmem:[#allocation7 + $0x18] sm:$0xff]
        %v301 = vld [vmem:[#allocation7 + $0x20] sm:$0xff]
        %v302 = vld [vmem:[#allocation7 + $0x28] sm:$0xff]
        %v303 = vld [vmem:[#allocation7 + $0x30] sm:$0xff]
        %v304 = vld [vmem:[#allocation7 + $0x38] sm:$0xff]
        %v305 = vld [vmem:[#allocation7 + $0x40] sm:$0xff]
        %v306 = vld [vmem:[#allocation7 + $0x48] sm:$0xff]
        %v307 = vld [vmem:[#allocation7 + $0x50] sm:$0xff]
        %v308 = vld [vmem:[#allocation7 + $0x58] sm:$0xff]
        %v309 = vld [vmem:[#allocation7 + $0x60] sm:$0xff]
        %v310 = vld [vmem:[#allocation7 + $0x68] sm:$0xff]
        %v311 = vld [vmem:[#allocation7 + $0x70] sm:$0xff]
        %v312 = vld [vmem:[#allocation7 + $0x78] sm:$0xff]
        %v313 = vld [vmem:[%s259] sm:$0xf]
        %v315 = vunpack.c.l.b16 %v313
        %v316 = vpack.c.b16 %v315, %v315
        %vm317 = vcmask 1043456
        %v320 = vsel %vm317, %v296, %v316
        %s321 = scalar_lea.vmem [#allocation7], 128
        %v322 = vld [vmem:[%s321] sm:$0xff]
        %v323 = vld [vmem:[%s321 + $0x8] sm:$0xff]
        %v324 = vld [vmem:[%s321 + $0x10] sm:$0xff]
        %v325 = vld [vmem:[%s321 + $0x18] sm:$0xff]
        %v326 = vld [vmem:[%s321 + $0x20] sm:$0xff]
        %v327 = vld [vmem:[%s321 + $0x28] sm:$0xff]
        %v328 = vld [vmem:[%s321 + $0x30] sm:$0xff]
        %v329 = vld [vmem:[%s321 + $0x38] sm:$0xff]
        %v330 = vld [vmem:[%s321 + $0x40] sm:$0xff]
        %v331 = vld [vmem:[%s321 + $0x48] sm:$0xff]
        %v332 = vld [vmem:[%s321 + $0x50] sm:$0xff]
        %v333 = vld [vmem:[%s321 + $0x58] sm:$0xff]
        %v334 = vld [vmem:[%s321 + $0x60] sm:$0xff]
        %v335 = vld [vmem:[%s321 + $0x68] sm:$0xff]
        %v336 = vld [vmem:[%s321 + $0x70] sm:$0xff]
        %v337 = vld [vmem:[%s321 + $0x78] sm:$0xff]
        %v338 = vshrl.u32 %v320, 16
        %v340 = vshll.u32 %v320, 16
        %v342 = vrot.slane %v340, 1
        %v343 = vor.u32 %v338, %v342
        %v361 = vunpack.c.l.b16 %v322
        %v362 = vunpack.c.h.b16 %v322
        %v363 = vunpack.c.l.b16 %v323
        %v364 = vunpack.c.h.b16 %v323
        %v365 = vunpack.c.l.b16 %v324
        %v366 = vunpack.c.h.b16 %v324
        %v367 = vunpack.c.l.b16 %v325
        %v368 = vunpack.c.h.b16 %v325
        %v369 = vunpack.c.l.b16 %v326
        %v370 = vunpack.c.h.b16 %v326
        %v371 = vunpack.c.l.b16 %v327
        %v372 = vunpack.c.h.b16 %v327
        %v373 = vunpack.c.l.b16 %v328
        %v374 = vunpack.c.h.b16 %v328
        %v375 = vunpack.c.l.b16 %v329
        %v376 = vunpack.c.h.b16 %v329
        %v377 = vunpack.c.l.b16 %v330
        %v378 = vunpack.c.h.b16 %v330
        %v379 = vunpack.c.l.b16 %v331
        %v380 = vunpack.c.h.b16 %v331
        %v381 = vunpack.c.l.b16 %v332
        %v382 = vunpack.c.h.b16 %v332
        %v383 = vunpack.c.l.b16 %v333
        %v384 = vunpack.c.h.b16 %v333
        %v385 = vunpack.c.l.b16 %v334
        %v386 = vunpack.c.h.b16 %v334
        %v387 = vunpack.c.l.b16 %v335
        %v388 = vunpack.c.h.b16 %v335
        %v389 = vunpack.c.l.b16 %v336
        %v390 = vunpack.c.h.b16 %v336
        %v391 = vunpack.c.l.b16 %v337
        %v392 = vunpack.c.h.b16 %v337
        %v393 = vpack.c.b16 %v363, %v361
        %v394 = vpack.c.b16 %v364, %v362
        %v395 = vpack.c.b16 %v367, %v365
        %v396 = vpack.c.b16 %v368, %v366
        %v397 = vpack.c.b16 %v371, %v369
        %v398 = vpack.c.b16 %v372, %v370
        %v399 = vpack.c.b16 %v375, %v373
        %v400 = vpack.c.b16 %v376, %v374
        %v401 = vpack.c.b16 %v379, %v377
        %v402 = vpack.c.b16 %v380, %v378
        %v403 = vpack.c.b16 %v383, %v381
        %v404 = vpack.c.b16 %v384, %v382
        %v405 = vpack.c.b16 %v387, %v385
        %v406 = vpack.c.b16 %v388, %v386
        %v407 = vpack.c.b16 %v391, %v389
        %v408 = vpack.c.b16 %v392, %v390
        %425 = vmatpush.bf16.msra.mxu0 %v407
        %426 = vmatpush.bf16.msra.mxu0 %v405
        %427 = vmatpush.bf16.msra.mxu0 %v403
        %428 = vmatpush.bf16.msra.mxu0 %v401
        %429 = vmatpush.bf16.msra.mxu0 %v399
        %430 = vmatpush.bf16.msra.mxu0 %v397
        %431 = vmatpush.bf16.msra.mxu0 %v395
        %432 = vmatpush.bf16.msra.mxu0 %v393
        %433 = vmatmul.bf16.gmra.mxu0 %v343
        %v434 = vpop.f32.mrf.mxu0
        %v435 = vadd.f32 0.0, %v434
        %v436 = vpop.f32.mrf.mxu0
        %437 = vdwg.mxu0
        %438 = vmatpush.bf16.msra.mxu0 %v408
        %439 = vmatpush.bf16.msra.mxu0 %v406
        %440 = vmatpush.bf16.msra.mxu0 %v404
        %441 = vmatpush.bf16.msra.mxu0 %v402
        %442 = vmatpush.bf16.msra.mxu0 %v400
        %443 = vmatpush.bf16.msra.mxu0 %v398
        %444 = vmatpush.bf16.msra.mxu0 %v396
        %445 = vmatpush.bf16.msra.mxu0 %v394
        %446 = vmatmul.bf16.gmra.mxu0 %v343
        %v447 = vpop.f32.mrf.mxu0
        %v448 = vadd.f32 0.0, %v447
        %v449 = vpop.f32.mrf.mxu0
        %450 = vdwg.mxu0
        %v467 = vunpack.c.l.b16 %v297
        %v468 = vunpack.c.h.b16 %v297
        %v469 = vunpack.c.l.b16 %v298
        %v470 = vunpack.c.h.b16 %v298
        %v471 = vunpack.c.l.b16 %v299
        %v472 = vunpack.c.h.b16 %v299
        %v473 = vunpack.c.l.b16 %v300
        %v474 = vunpack.c.h.b16 %v300
        %v475 = vunpack.c.l.b16 %v301
        %v476 = vunpack.c.h.b16 %v301
        %v477 = vunpack.c.l.b16 %v302
        %v478 = vunpack.c.h.b16 %v302
        %v479 = vunpack.c.l.b16 %v303
        %v480 = vunpack.c.h.b16 %v303
        %v481 = vunpack.c.l.b16 %v304
        %v482 = vunpack.c.h.b16 %v304
        %v483 = vunpack.c.l.b16 %v305
        %v484 = vunpack.c.h.b16 %v305
        %v485 = vunpack.c.l.b16 %v306
        %v486 = vunpack.c.h.b16 %v306
        %v487 = vunpack.c.l.b16 %v307
        %v488 = vunpack.c.h.b16 %v307
        %v489 = vunpack.c.l.b16 %v308
        %v490 = vunpack.c.h.b16 %v308
        %v491 = vunpack.c.l.b16 %v309
        %v492 = vunpack.c.h.b16 %v309
        %v493 = vunpack.c.l.b16 %v310
        %v494 = vunpack.c.h.b16 %v310
        %v495 = vunpack.c.l.b16 %v311
        %v496 = vunpack.c.h.b16 %v311
        %v497 = vunpack.c.l.b16 %v312
        %v498 = vunpack.c.h.b16 %v312
        %v499 = vpack.c.b16 %v469, %v467
        %v500 = vpack.c.b16 %v470, %v468
        %v501 = vpack.c.b16 %v473, %v471
        %v502 = vpack.c.b16 %v474, %v472
        %v503 = vpack.c.b16 %v477, %v475
        %v504 = vpack.c.b16 %v478, %v476
        %v505 = vpack.c.b16 %v481, %v479
        %v506 = vpack.c.b16 %v482, %v480
        %v507 = vpack.c.b16 %v485, %v483
        %v508 = vpack.c.b16 %v486, %v484
        %v509 = vpack.c.b16 %v489, %v487
        %v510 = vpack.c.b16 %v490, %v488
        %v511 = vpack.c.b16 %v493, %v491
        %v512 = vpack.c.b16 %v494, %v492
        %v513 = vpack.c.b16 %v497, %v495
        %v514 = vpack.c.b16 %v498, %v496
        %531 = vmatpush.bf16.msra.mxu0 %v513
        %532 = vmatpush.bf16.msra.mxu0 %v511
        %533 = vmatpush.bf16.msra.mxu0 %v509
        %534 = vmatpush.bf16.msra.mxu0 %v507
        %535 = vmatpush.bf16.msra.mxu0 %v505
        %536 = vmatpush.bf16.msra.mxu0 %v503
        %537 = vmatpush.bf16.msra.mxu0 %v501
        %538 = vmatpush.bf16.msra.mxu0 %v499
        %539 = vmatmul.bf16.gmra.mxu0 %v296
        %v540 = vpop.f32.mrf.mxu0
        %v541 = vadd.f32 %v435, %v540
        %v542 = vpop.f32.mrf.mxu0
        %543 = vdwg.mxu0
        %544 = vmatpush.bf16.msra.mxu0 %v514
        %545 = vmatpush.bf16.msra.mxu0 %v512
        %546 = vmatpush.bf16.msra.mxu0 %v510
        %547 = vmatpush.bf16.msra.mxu0 %v508
        %548 = vmatpush.bf16.msra.mxu0 %v506
        %549 = vmatpush.bf16.msra.mxu0 %v504
        %550 = vmatpush.bf16.msra.mxu0 %v502
        %551 = vmatpush.bf16.msra.mxu0 %v500
        %552 = vmatmul.bf16.gmra.mxu0 %v296
        %v553 = vpop.f32.mrf.mxu0
        %v554 = vadd.f32 %v448, %v553
        %v555 = vpop.f32.mrf.mxu0
        %556 = vdwg.mxu0
        %v557 = vld [vmem:[%s3] sm:$0x3]
        %v559 = vperm.slane %v557, 0
        %v560 = vperm.slane %v557, 1
        %v563 = vadd.f32 %v541, %v559
        %v564 = vadd.f32 %v554, %v560
        %v565 = vsub.f32 0.0, %v564
        %v566 = vmul.f32 %v565, 1.442695
        %v567 = vpow.pop %v566
        %v568 = vadd.f32 %v567, 1.0
        %v569 = vrcp.pop %v568
        %v570 = vmul.f32 %v563, %v569
        %v571 = vpack.c.bf16 %v570, %v570
        %572 = vst [vmem:[%s294] sm:$0xf] %v571
        %s573 = sand.u32 %s146, 1
        %s574 = scalar_lea.sflag [#allocation4], %s573
        %s575 = sand.u32 %s146, 1
        %s576 = smul.addr %s575, 4
        %s577 = scalar_lea.vmem [#allocation8], %s576
        // Predicated region
        $region49: #{tpu_custom_call.1} parent=35 // pred_check
          %p578 = pneg %p156
        $region50: #{tpu_custom_call.1} parent=35 // pred_check_branch
          %580 = sbr.rel (%p578) target = $region52
        $region51: #{tpu_custom_call.1} parent=35 // pred_region
          %582 = vsyncadd %s574, 0
          %s583 = sadd.s32 %s29, %s28
          %s584 = smul.addr %s583, 4
          %s585 = scalar_lea.hbm %s4, %s584
          %s587 = sshll.u32 %s577, 4
          %s588 = int_to_ptr.vmem [resolvable:$true] %s587
          %s589 = sshll.u32 %s585, 4
          %s590 = int_to_ptr.hbm [resolvable:$true] %s589
          %592 = dma.vmem_to_hbm [thread:$0]  %s588, 64, %s590, %s574
        $region52: #{tpu_custom_call.1} parent=35 // pred_fallthru
          _
      $region36: #{tpu_custom_call.1} parent=5 // pred_fallthru
        _
      %p593 = scmp.le.s32.totalorder 2, %s19
      // Predicated region
      $region53: #{tpu_custom_call.1} parent=5 // pred_check
        %p594 = pneg %p593
      $region54: #{tpu_custom_call.1} parent=5 // pred_check_branch
        %596 = sbr.rel (%p594) target = $region56
      $region55: #{tpu_custom_call.1} parent=5 // pred_region
        %s597 = ssub.s32 %s19, 2
        // Predicated region
        $region57: #{tpu_custom_call.1} parent=55 // pred_check
          %p598 = pneg %p162
        $region58: #{tpu_custom_call.1} parent=55 // pred_check_branch
          %600 = sbr.rel (%p598) target = $region60
        $region59: #{tpu_custom_call.1} parent=55 // pred_region
          %s601 = sand.u32 %s147, 1
          %s602 = scalar_lea.sflag [#allocation4], %s601
          %s603 = sand.u32 %s147, 1
          %s604 = smul.addr %s603, 4
          %s605 = scalar_lea.vmem [#allocation8], %s604
          %607 = dma.done %s602, 64
        $region60: #{tpu_custom_call.1} parent=55 // pred_fallthru
          _
      $region56: #{tpu_custom_call.1} parent=5 // pred_fallthru
        _
    $region6: #{tpu_custom_call.1} parent=1 // loop_footer
      %s23 = sadd.s32 1, %s19
    $region7: #{tpu_custom_call.1} parent=1 // loop_footer_branch
      %18 = sbr.rel target = $region3
    $region8: #{tpu_custom_call.1} parent=1 // loop_exit
      _
    %608 = vsyncpa [#allocation3], 1
    %s609 = scalar_lea.sflag [#allocation3], 1
    %610 = vsyncpa %s609, 1
    %611 = vsyncpa [#allocation6], 1
    %s612 = scalar_lea.sflag [#allocation6], 1
    %613 = vsyncpa %s612, 1
    %614 = vsyncpa [#allocation4], 1
    %s615 = scalar_lea.sflag [#allocation4], 1
    %616 = vsyncpa %s615, 1

</llo_original>
